<compile_context>
chip_gen: v7x
topology: tpu7x:2x2x1
jax: 0.10.0
libtpu: 0.0.40
codegen_flags: <defaults>
</compile_context>

<pallas_src>
import jax
import jax.numpy as jnp
from jax.experimental import pallas as pl
from jax.experimental.pallas import tpu as pltpu


_EPS = 1e-12            # F.normalize default eps (applied to the L2 norm)
_LANES = 128
_MAX_BATCH_TILE = 512   # ~85% of HBM roofline for mem-bound tiles (measured)


def _round_up(x, m):
    return ((x + m - 1) // m) * m


def _readout_ris_kernel(x_ref, w_ref, b_ref, out_ref):
    # Fused Linear(in_dim -> 2*N_pad) + per-(re, im)-pair L2 normalization.
    x = x_ref[...]                                              # (bt, D) f32
    y = jnp.dot(x, w_ref[...], preferred_element_type=jnp.float32) + b_ref[...]
    n = y.shape[-1] // 2                                        # N_pad, % 128 == 0
    re = y[:, :n]                                               # 128-lane aligned
    im = y[:, n:]
    # 1/max(||(re,im)||, eps) == rsqrt(max(re^2 + im^2, eps^2)) -> EUP, not VALU div.
    inv = jax.lax.rsqrt(jnp.maximum(re * re + im * im, _EPS * _EPS))
    # Two unmasked, 128-aligned slab stores (no lane-axis concat / temporaries).
    out_ref[:, :n] = re * inv
    out_ref[:, n:] = im * inv


def _pick_batch_tile(batch):
    # Fixed large tile (multiple of 8); the cdiv grid masks the ragged last
    # tile, so no divisor hunting and no single-giant-block fallback.
    # Cap at ceil(B/2) rounded up to 8 so the "parallel" batch axis has >= 2
    # steps whenever B allows (so it can shard across v7x's 2 TensorCores).
    half = _round_up(-(-batch // 2), 8)
    return max(8, min(_MAX_BATCH_TILE, half))


def init_params(key, in_dim, n_out):
    """Deterministic synthetic parameters (shapes from readout_RIS.__init__)."""
    k_w, k_b = jax.random.split(key, 2)
    return {
        # classifier: Linear(in_dim, 2*N); weight stored transposed (in, out),
        # columns [:N] = re outputs, [N:] = im outputs.
        "w": 0.1 * jax.random.normal(k_w, (in_dim, 2 * n_out), jnp.float32),
        "b": 0.1 * jax.random.normal(k_b, (2 * n_out,), jnp.float32),
    }


def _pad_params(W, b, n):
    """Zero-pad each output half so N_pad % 128 == 0 (lane-dense out_spec)."""
    d = W.shape[0]
    n_pad = _round_up(max(n, 1), _LANES)
    if n_pad == n:
        return W, b.reshape(1, 2 * n), n_pad
    W_p = jnp.zeros((d, 2 * n_pad), jnp.float32)
    W_p = W_p.at[:, :n].set(W[:, :n])                    # re columns
    W_p = W_p.at[:, n_pad:n_pad + n].set(W[:, n:])       # im columns
    b_p = jnp.zeros((1, 2 * n_pad), jnp.float32)
    b_p = b_p.at[0, :n].set(b[:n])
    b_p = b_p.at[0, n_pad:n_pad + n].set(b[n:])
    return W_p, b_p, n_pad


def readout_ris_forward(x, params, *, pair_last=True):
    """Forward pass of readout_RIS.  Returns (phase, x).

    pair_last=True matches the PyTorch module exactly: phase is (B, N, 2) with
    [..., 0]=re, [..., 1]=im.  pair_last=False returns the lane-dense halves
    layout (B, 2, N) and skips the extra HBM transpose pass in the wrapper.
    """
    B, D = x.shape
    W = params["w"]
    b = params["b"]
    N = W.shape[1] // 2

    W_p, b_p, n_pad = _pad_params(W, b, N)
    two_n_pad = 2 * n_pad

    bt = _pick_batch_tile(B)
    grid = (pl.cdiv(B, bt),)

    # VMEM budget: single-buffered W/b + double-buffered x/out tiles +
    # epilogue temporaries, with headroom; stay below v7x's 64 MiB physical.
    est = 4 * (D * two_n_pad + 2 * two_n_pad
               + 2 * bt * D + 6 * bt * two_n_pad) + (2 << 20)
    vmem_limit = int(min(max(est, 32 << 20), 56 << 20))
    # TODO(synk): if D * 2N * 4 ever exceeds this budget (huge N on v7x), add a
    # second grid axis tiling W's output columns instead of keeping W resident.

    def call(single_buffer_weights):
        if single_buffer_weights:
            # Constant index_map -> weight/bias DMA'd once; single-buffer them.
            def const_spec(shape, imap):
                return pl.BlockSpec(shape, imap, pipeline_mode=pl.Buffered(1))
        else:
            def const_spec(shape, imap):
                return pl.BlockSpec(shape, imap)
        return pl.pallas_call(
            _readout_ris_kernel,
            out_shape=jax.ShapeDtypeStruct((B, two_n_pad), jnp.float32),
            grid=grid,
            in_specs=[
                pl.BlockSpec((bt, D), lambda i: (i, 0)),          # x: batch-tiled
                const_spec((D, two_n_pad), lambda i: (0, 0)),     # W: resident
                const_spec((1, two_n_pad), lambda i: (0, 0)),     # b: resident
            ],
            out_specs=pl.BlockSpec((bt, two_n_pad), lambda i: (i, 0)),
            compiler_params=pltpu.CompilerParams(
                dimension_semantics=("parallel",),
                vmem_limit_bytes=vmem_limit),
        )(x, W_p, b_p)

    try:
        y = call(True)
    except Exception:   # older Pallas without BlockSpec pipeline_mode support
        y = call(False)

    # Layout plumbing outside the kernel (the real columns of each half).
    re = y[:, :N]
    im = y[:, n_pad:n_pad + N]
    if pair_last:
        # torch layout (B, N, 2): [..., 0]=re, [..., 1]=im.
        phase = jnp.stack([re, im], axis=2)
    else:
        # Lane-dense halves layout (B, 2, N); free reshape when N is 128-aligned.
        if n_pad == N:
            phase = y.reshape(B, 2, N)
        else:
            phase = jnp.stack([re, im], axis=1)
    # PyTorch forward returns (normalized phase, x) — x passes through untouched.
    return phase, x


def reference_forward(x, params):
    """Plain-JAX transliteration of the PyTorch forward, for verification."""
    W, b = params["w"], params["b"]
    y = x @ W + b
    N = y.shape[-1] // 2
    phase = jnp.stack([y[:, :N], y[:, N:]], axis=2)              # (B, N, 2)
    norm = jnp.sqrt(jnp.sum(phase * phase, axis=2, keepdims=True))
    return phase / jnp.maximum(norm, _EPS), x


if __name__ == "__main__":
    B, in_dim, N = 8, 32, 16

    key = jax.random.PRNGKey(0)
    k_x, k_p = jax.random.split(key, 2)
    x = jax.random.normal(k_x, (B, in_dim), jnp.float32)
    params = init_params(k_p, in_dim, N)

    phase_out, x_out = readout_ris_forward(x, params)
    jax.block_until_ready((phase_out, x_out))

    ref_phase, ref_x = reference_forward(x, params)
    assert phase_out.shape == (B, N, 2)
    assert x_out.shape == (B, in_dim)
    assert jnp.allclose(phase_out, ref_phase, rtol=1e-3, atol=1e-3)
    assert jnp.allclose(x_out, ref_x)

    # Lane-dense halves contract (B, 2, N) for downstream consumers.
    halves, _ = readout_ris_forward(x, params, pair_last=False)
    jax.block_until_ready(halves)
    assert halves.shape == (B, 2, N)
    assert jnp.allclose(halves, jnp.moveaxis(ref_phase, 2, 1), rtol=1e-3, atol=1e-3)

    print("KERNEL_OK")
</pallas_src>

<mosaic_0001>
module attributes {stable_mosaic.version = 11 : i64} {
  func.func @_readout_ris_kernel(%arg0: i32, %arg1: memref<8x32xf32, #tpu.memory_space<vmem>>, %arg2: memref<32x256xf32, #tpu.memory_space<vmem>>, %arg3: memref<1x256xf32, #tpu.memory_space<vmem>>, %arg4: memref<8x256xf32, #tpu.memory_space<vmem>>) attributes {dimension_semantics = [#tpu.dimension_semantics<parallel>], iteration_bounds = array<i64: 1>, scalar_prefetch = 0 : i64, scratch_operands = 0 : i64, tpu.core_type = #tpu.core_type<tc>, window_params = [{transform_indices = @transform_0, window_bounds = array<i64: 8, 32>}, {pipeline_mode = #tpu.pipeline_mode<synchronous>, transform_indices = @transform_1, window_bounds = array<i64: 32, 256>}, {pipeline_mode = #tpu.pipeline_mode<synchronous>, transform_indices = @transform_2, window_bounds = array<i64: 1, 256>}, {transform_indices = @transform_3, window_bounds = array<i64: 8, 256>}]} {
    %c0 = arith.constant 0 : index
    %c0_0 = arith.constant 0 : index
    %0 = vector.load %arg1[%c0, %c0_0] : memref<8x32xf32, #tpu.memory_space<vmem>>, vector<8x32xf32>
    %c0_1 = arith.constant 0 : index
    %c0_2 = arith.constant 0 : index
    %1 = vector.load %arg2[%c0_1, %c0_2] : memref<32x256xf32, #tpu.memory_space<vmem>>, vector<32x256xf32>
    %cst = arith.constant dense<0.000000e+00> : vector<8x256xf32>
    %2 = tpu.matmul %0, %1, %cst {dimension_numbers = #tpu.dot_dimension_numbers<[1], [0], [0], [1], [0, 0, 1, 1], [], []>} : vector<8x32xf32>, vector<32x256xf32>, vector<8x256xf32> -> vector<8x256xf32>
    %c0_3 = arith.constant 0 : index
    %c0_4 = arith.constant 0 : index
    %3 = vector.load %arg3[%c0_3, %c0_4] : memref<1x256xf32, #tpu.memory_space<vmem>>, vector<1x256xf32>
    %4 = vector.broadcast %3 : vector<1x256xf32> to vector<8x256xf32>
    %5 = arith.addf %2, %4 : vector<8x256xf32>
    %6 = vector.extract_strided_slice %5 {offsets = [0, 0], sizes = [8, 128], strides = [1, 1]} : vector<8x256xf32> to vector<8x128xf32>
    %7 = vector.extract_strided_slice %5 {offsets = [0, 128], sizes = [8, 128], strides = [1, 1]} : vector<8x256xf32> to vector<8x128xf32>
    %8 = arith.mulf %6, %6 : vector<8x128xf32>
    %9 = arith.mulf %7, %7 : vector<8x128xf32>
    %10 = arith.addf %8, %9 : vector<8x128xf32>
    %cst_5 = arith.constant 1.000000e-24 : f32
    %11 = vector.broadcast %cst_5 : f32 to vector<8x128xf32>
    %12 = arith.maximumf %10, %11 : vector<8x128xf32>
    %13 = math.rsqrt %12 : vector<8x128xf32>
    %14 = arith.mulf %6, %13 : vector<8x128xf32>
    %c0_6 = arith.constant 0 : index
    %c0_7 = arith.constant 0 : index
    %15 = vector.load %arg4[%c0_6, %c0_7] : memref<8x256xf32, #tpu.memory_space<vmem>>, vector<8x128xf32>
    tpu.vector_store %arg4[%c0_6, %c0_7], %14 {strides = array<i32>} : memref<8x256xf32, #tpu.memory_space<vmem>>, vector<8x128xf32>,
    %16 = arith.mulf %7, %13 : vector<8x128xf32>
    %c0_8 = arith.constant 0 : index
    %c128 = arith.constant 128 : index
    %17 = vector.load %arg4[%c0_8, %c128] : memref<8x256xf32, #tpu.memory_space<vmem>>, vector<8x128xf32>
    tpu.vector_store %arg4[%c0_8, %c128], %16 {strides = array<i32>} : memref<8x256xf32, #tpu.memory_space<vmem>>, vector<8x128xf32>,
    return
  }
  func.func @transform_0(%arg0: i32) -> (i32, i32) {
    %c0_i32 = arith.constant 0 : i32
    %c0_i32_0 = arith.constant 0 : i32
    return %arg0, %c0_i32 : i32, i32
  }
  func.func @transform_1(%arg0: i32) -> (i32, i32) {
    %c0_i32 = arith.constant 0 : i32
    %c0_i32_0 = arith.constant 0 : i32
    %c0_i32_1 = arith.constant 0 : i32
    return %c0_i32, %c0_i32_0 : i32, i32
  }
  func.func @transform_2(%arg0: i32) -> (i32, i32) {
    %c0_i32 = arith.constant 0 : i32
    %c0_i32_0 = arith.constant 0 : i32
    %c0_i32_1 = arith.constant 0 : i32
    return %c0_i32, %c0_i32_0 : i32, i32
  }
  func.func @transform_3(%arg0: i32) -> (i32, i32) {
    %c0_i32 = arith.constant 0 : i32
    %c0_i32_0 = arith.constant 0 : i32
    return %arg0, %c0_i32 : i32, i32
  }
}

module attributes {stable_mosaic.version = 11 : i64} {
  func.func @_readout_ris_kernel(%arg0: i32, %arg1: memref<8x32xf32, #tpu.memory_space<vmem>>, %arg2: memref<32x256xf32, #tpu.memory_space<vmem>>, %arg3: memref<1x256xf32, #tpu.memory_space<vmem>>, %arg4: memref<8x256xf32, #tpu.memory_space<vmem>>) attributes {dimension_semantics = [#tpu.dimension_semantics<parallel>], iteration_bounds = array<i64: 1>, scalar_prefetch = 0 : i64, scratch_operands = 0 : i64, tpu.core_type = #tpu.core_type<tc>, window_params = [{transform_indices = @transform_0, window_bounds = array<i64: 8, 32>}, {pipeline_mode = #tpu.pipeline_mode<synchronous>, transform_indices = @transform_1, window_bounds = array<i64: 32, 256>}, {pipeline_mode = #tpu.pipeline_mode<synchronous>, transform_indices = @transform_2, window_bounds = array<i64: 1, 256>}, {transform_indices = @transform_3, window_bounds = array<i64: 8, 256>}]} {
    %c0 = arith.constant 0 : index
    %c0_0 = arith.constant 0 : index
    %0 = vector.load %arg1[%c0, %c0_0] : memref<8x32xf32, #tpu.memory_space<vmem>>, vector<8x32xf32>
    %c0_1 = arith.constant 0 : index
    %c0_2 = arith.constant 0 : index
    %1 = vector.load %arg2[%c0_1, %c0_2] : memref<32x256xf32, #tpu.memory_space<vmem>>, vector<32x256xf32>
    %cst = arith.constant dense<0.000000e+00> : vector<8x256xf32>
    %2 = tpu.matmul %0, %1, %cst {dimension_numbers = #tpu.dot_dimension_numbers<[1], [0], [0], [1], [0, 0, 1, 1], [], []>} : vector<8x32xf32>, vector<32x256xf32>, vector<8x256xf32> -> vector<8x256xf32>
    %c0_3 = arith.constant 0 : index
    %c0_4 = arith.constant 0 : index
    %3 = vector.load %arg3[%c0_3, %c0_4] : memref<1x256xf32, #tpu.memory_space<vmem>>, vector<1x256xf32>
    %4 = vector.broadcast %3 : vector<1x256xf32> to vector<8x256xf32>
    %5 = arith.addf %2, %4 : vector<8x256xf32>
    %6 = vector.extract_strided_slice %5 {offsets = [0, 0], sizes = [8, 128], strides = [1, 1]} : vector<8x256xf32> to vector<8x128xf32>
    %7 = vector.extract_strided_slice %5 {offsets = [0, 128], sizes = [8, 128], strides = [1, 1]} : vector<8x256xf32> to vector<8x128xf32>
    %8 = arith.mulf %6, %6 : vector<8x128xf32>
    %9 = arith.mulf %7, %7 : vector<8x128xf32>
    %10 = arith.addf %8, %9 : vector<8x128xf32>
    %cst_5 = arith.constant 1.000000e-24 : f32
    %11 = vector.broadcast %cst_5 : f32 to vector<8x128xf32>
    %12 = arith.maximumf %10, %11 : vector<8x128xf32>
    %13 = math.rsqrt %12 : vector<8x128xf32>
    %14 = arith.mulf %6, %13 : vector<8x128xf32>
    %c0_6 = arith.constant 0 : index
    %c0_7 = arith.constant 0 : index
    %15 = vector.load %arg4[%c0_6, %c0_7] : memref<8x256xf32, #tpu.memory_space<vmem>>, vector<8x128xf32>
    tpu.vector_store %arg4[%c0_6, %c0_7], %14 {strides = array<i32>} : memref<8x256xf32, #tpu.memory_space<vmem>>, vector<8x128xf32>,
    %16 = arith.mulf %7, %13 : vector<8x128xf32>
    %c0_8 = arith.constant 0 : index
    %c128 = arith.constant 128 : index
    %17 = vector.load %arg4[%c0_8, %c128] : memref<8x256xf32, #tpu.memory_space<vmem>>, vector<8x128xf32>
    tpu.vector_store %arg4[%c0_8, %c128], %16 {strides = array<i32>} : memref<8x256xf32, #tpu.memory_space<vmem>>, vector<8x128xf32>,
    return
  }
  func.func @transform_0(%arg0: i32) -> (i32, i32) {
    %c0_i32 = arith.constant 0 : i32
    %c0_i32_0 = arith.constant 0 : i32
    return %arg0, %c0_i32 : i32, i32
  }
  func.func @transform_1(%arg0: i32) -> (i32, i32) {
    %c0_i32 = arith.constant 0 : i32
    %c0_i32_0 = arith.constant 0 : i32
    %c0_i32_1 = arith.constant 0 : i32
    return %c0_i32, %c0_i32_0 : i32, i32
  }
  func.func @transform_2(%arg0: i32) -> (i32, i32) {
    %c0_i32 = arith.constant 0 : i32
    %c0_i32_0 = arith.constant 0 : i32
    %c0_i32_1 = arith.constant 0 : i32
    return %c0_i32, %c0_i32_0 : i32, i32
  }
  func.func @transform_3(%arg0: i32) -> (i32, i32) {
    %c0_i32 = arith.constant 0 : i32
    %c0_i32_0 = arith.constant 0 : i32
    return %arg0, %c0_i32 : i32, i32
  }
}

</mosaic_0001>

<llo_original>
// kernel: tpu_custom_call.1
$region0: #{tpu_custom_call.1}
  #allocation0 [shape = 'u32[]', space=smem, size = 0x4, offset = 0x4, fixed_abs, tag = 'smem constant byte address 0x4 - core index']
  #allocation1 [shape = 'u32[144,128]{1,0:T(1,128)}', space=vmem, size = 0x12000, scoped, tag = 'internal scratch']
  %s0 = inlined_call_operand.hbm [shape: f32[8,32], index: 0, kind: input, shape index: {}]
  %s1 = inlined_call_operand.hbm [shape: f32[32,256], index: 1, kind: input, shape index: {}]
  %s2 = inlined_call_operand.vmem [shape: f32[1,256], index: 2, kind: input, shape index: {}]
  %s3 = inlined_call_operand.hbm [shape: f32[8,256], index: 3, kind: output, shape index: {}]
  %s4 = sld [smem:[#allocation0]]
  $region30: #{tpu_custom_call.1} parent=0
    _
  %s6 = ssub.s32 1, %s4
  %s7 = scalar_select 0, %s6, %s4
  $region1: #{tpu_custom_call.1} parent=0
    #allocation2 [shape = 'u8[4096]{0}', space=vmem, size = 0x1000, scoped, tag = 'input window, operand 0, single buffered']
    #allocation3 [shape = 's32[1]{0}', space=sflag, size = 0x4, scoped, tag = 'scoped memory for tpu_custom_call.1']
    #allocation4 [shape = 's32[1]{0}', space=sflag, size = 0x4, scoped, tag = 'scoped memory for tpu_custom_call.1']
    #allocation5 [shape = 'u8[32768]{0}', space=vmem, size = 0x8000, scoped, tag = 'input window, operand 1, single buffered']
    #allocation6 [shape = 's32[1]{0}', space=sflag, size = 0x4, scoped, tag = 'scoped memory for tpu_custom_call.1']
    #allocation7 [shape = 'u8[8192]{0}', space=vmem, size = 0x2000, scoped, tag = 'output window, operand 0, single buffered']
    %8 = vsyncpa [#allocation3], 0
    %9 = vsyncpa [#allocation6], 0
    %10 = vsyncpa [#allocation4], 0
    // Predicated region
    $region2: #{tpu_custom_call.1} parent=1 // pred_check
      _
    $region3: #{tpu_custom_call.1} parent=1 // pred_check_branch
      %12 = sbr.rel (0) target = $region5
    $region4: #{tpu_custom_call.1} parent=1 // pred_region
      %s14 = ssub.s32 128, 128
      %15 = vsyncadd [#allocation3], %s14
      %s17 = sshll.u32 [#allocation2], 4
      %s18 = int_to_ptr.vmem [resolvable:$true] %s17
      %20 = dma.hbm_to_vmem [thread:$0]  %s0, 128, %s18, [#allocation3]
    $region5: #{tpu_custom_call.1} parent=1 // pred_fallthru
      _
    // Predicated region
    $region6: #{tpu_custom_call.1} parent=1 // pred_check
      _
    $region7: #{tpu_custom_call.1} parent=1 // pred_check_branch
      %22 = sbr.rel (0) target = $region9
    $region8: #{tpu_custom_call.1} parent=1 // pred_region
      %s24 = ssub.s32 1024, 1024
      %25 = vsyncadd [#allocation6], %s24
      %s26 = sshll.u32 [#allocation5], 4
      %s27 = int_to_ptr.vmem [resolvable:$true] %s26
      %32 = dma.hbm_to_vmem [thread:$0]  %s1, 1024, %s27, [#allocation6], 256, 256, 16
    $region9: #{tpu_custom_call.1} parent=1 // pred_fallthru
      _
    // Predicated region
    $region10: #{tpu_custom_call.1} parent=1 // pred_check
      _
    $region11: #{tpu_custom_call.1} parent=1 // pred_check_branch
      %34 = sbr.rel (0) target = $region13
    $region12: #{tpu_custom_call.1} parent=1 // pred_region
      _
    $region13: #{tpu_custom_call.1} parent=1 // pred_fallthru
      _
    // Predicated region
    $region14: #{tpu_custom_call.1} parent=1 // pred_check
      _
    $region15: #{tpu_custom_call.1} parent=1 // pred_check_branch
      %36 = sbr.rel (0) target = $region17
    $region16: #{tpu_custom_call.1} parent=1 // pred_region
      %37 = dma.done [#allocation3], 128
    $region17: #{tpu_custom_call.1} parent=1 // pred_fallthru
      _
    // Predicated region
    $region18: #{tpu_custom_call.1} parent=1 // pred_check
      _
    $region19: #{tpu_custom_call.1} parent=1 // pred_check_branch
      %39 = sbr.rel (0) target = $region21
    $region20: #{tpu_custom_call.1} parent=1 // pred_region
      %40 = dma.done [#allocation6], 1024
    $region21: #{tpu_custom_call.1} parent=1 // pred_fallthru
      _
    %v41 = vld [vmem:[#allocation2] sm:$0xff]
    %v42 = vld [vmem:[#allocation5] sm:$0xff]
    %v43 = vld [vmem:[#allocation5 + $0x8] sm:$0xff]
    %v44 = vld [vmem:[#allocation5 + $0x10] sm:$0xff]
    %v45 = vld [vmem:[#allocation5 + $0x18] sm:$0xff]
    %v46 = vld [vmem:[#allocation5 + $0x20] sm:$0xff]
    %v47 = vld [vmem:[#allocation5 + $0x28] sm:$0xff]
    %v48 = vld [vmem:[#allocation5 + $0x30] sm:$0xff]
    %v49 = vld [vmem:[#allocation5 + $0x38] sm:$0xff]
    %v50 = vld [vmem:[%s2] sm:$0x3]
    %v52 = vlaneseq
    %v53 = vshrl.u32 %v52, 7
    %v54 = vsub.s32 0, %v53
    %v55 = vrot.slane %v50, %v54
    %v56 = vlaneseq
    %v57 = vshrl.u32 %v56, 7
    %v58 = vsub.s32 1, %v57
    %v59 = vrot.slane %v50, %v58
    %vm62 = vcmask 261120
    %v64 = vsel %vm62, %v41, 0
    %66 = vmatprep.subr.mxu0 %v43
    %67 = vmatpush1.msra.mxu0 %v42
    %68 = vmatprep.subr.mxu0 %v45
    %69 = vmatpush1.msra.mxu0 %v44
    %70 = vmatprep.subr.mxu0 %v47
    %71 = vmatpush1.msra.mxu0 %v46
    %72 = vmatprep.subr.mxu0 %v49
    %73 = vmatpush1.msra.mxu0 %v48
    %74 = vmatprep.subr.mxu0 0.0
    %75 = vmatpush1.msra.mxu0 0.0
    %76 = vmatprep.subr.mxu0 0.0
    %77 = vmatpush1.msra.mxu0 0.0
    %78 = vmatprep.subr.mxu0 0.0
    %79 = vmatpush1.msra.mxu0 0.0
    %80 = vmatprep.subr.mxu0 0.0
    %81 = vmatpush1.msra.mxu0 0.0
    %82 = vmatprep.subr.mxu0 0.0
    %83 = vmatpush1.msra.mxu0 0.0
    %84 = vmatprep.subr.mxu0 0.0
    %85 = vmatpush1.msra.mxu0 0.0
    %86 = vmatprep.subr.mxu0 0.0
    %87 = vmatpush1.msra.mxu0 0.0
    %88 = vmatprep.subr.mxu0 0.0
    %89 = vmatpush1.msra.mxu0 0.0
    %90 = vmatprep.subr.mxu0 0.0
    %91 = vmatpush1.msra.mxu0 0.0
    %92 = vmatprep.subr.mxu0 0.0
    %93 = vmatpush1.msra.mxu0 0.0
    %94 = vmatprep.subr.mxu0 0.0
    %95 = vmatpush1.msra.mxu0 0.0
    %96 = vmatprep.subr.mxu0 0.0
    %97 = vmatpush1.msra.mxu0 0.0
    %98 = vmatprep.subr.mxu0 0.0
    %99 = vmatpush1.msra.mxu0 0.0
    %100 = vmatprep.subr.mxu0 0.0
    %101 = vmatpush1.msra.mxu0 0.0
    %102 = vmatprep.subr.mxu0 0.0
    %103 = vmatpush1.msra.mxu0 0.0
    %104 = vmatprep.subr.mxu0 0.0
    %105 = vmatpush1.msra.mxu0 0.0
    %106 = vmatprep.subr.mxu0 0.0
    %107 = vmatpush1.msra.mxu0 0.0
    %108 = vmatprep.subr.mxu0 0.0
    %109 = vmatpush1.msra.mxu0 0.0
    %110 = vmatprep.subr.mxu0 0.0
    %111 = vmatpush1.msra.mxu0 0.0
    %112 = vmatprep.subr.mxu0 0.0
    %113 = vmatpush1.msra.mxu0 0.0
    %114 = vmatprep.subr.mxu0 0.0
    %115 = vmatpush1.msra.mxu0 0.0
    %116 = vmatprep.subr.mxu0 0.0
    %117 = vmatpush1.msra.mxu0 0.0
    %118 = vmatprep.subr.mxu0 0.0
    %119 = vmatpush1.msra.mxu0 0.0
    %120 = vmatprep.subr.mxu0 0.0
    %121 = vmatpush1.msra.mxu0 0.0
    %122 = vmatprep.subr.mxu0 0.0
    %123 = vmatpush1.msra.mxu0 0.0
    %124 = vmatprep.subr.mxu0 0.0
    %125 = vmatpush1.msra.mxu0 0.0
    %126 = vmatprep.subr.mxu0 0.0
    %127 = vmatpush1.msra.mxu0 0.0
    %128 = vmatprep.subr.mxu0 0.0
    %129 = vmatpush1.msra.mxu0 0.0
    %130 = vmatprep.mubr.f32.mxu0 0.0
    %131 = vmatmul.mubr.f32.gmra.mrb[0].mxu0 %v64
    %v132 = vpop.f32.mrb[0].mxu0
    %v133 = vadd.f32 %v55, %v132
    %v134 = vpop.f32.mrb[0].mxu0
    %v135 = vadd.f32 %v59, %v134
    %136 = vdwg.mxu0
    %v137 = vmul.f32 %v133, %v133
    %v138 = vmul.f32 %v135, %v135
    %v139 = vadd.f32 %v137, %v138
    %v140 = vmax.f32 %v139, 1e-24
    %v141 = vrsqrt.pop %v140
    %v142 = vmul.f32 %v133, %v141
    %143 = vst [vmem:[#allocation7] sm:$0xff] %v142
    %v144 = vmul.f32 %v135, %v141
    %145 = vst [vmem:[#allocation7 + $0x8] sm:$0xff] %v144
    // Predicated region
    $region22: #{tpu_custom_call.1} parent=1 // pred_check
      _
    $region23: #{tpu_custom_call.1} parent=1 // pred_check_branch
      %147 = sbr.rel (0) target = $region25
    $region24: #{tpu_custom_call.1} parent=1 // pred_region
      %s149 = ssub.s32 256, 256
      %150 = vsyncadd [#allocation4], %s149
      %s152 = sshll.u32 [#allocation7], 4
      %s153 = int_to_ptr.vmem [resolvable:$true] %s152
      %155 = dma.vmem_to_hbm [thread:$0]  %s153, 256, %s3, [#allocation4]
    $region25: #{tpu_custom_call.1} parent=1 // pred_fallthru
      _
    // Predicated region
    $region26: #{tpu_custom_call.1} parent=1 // pred_check
      _
    $region27: #{tpu_custom_call.1} parent=1 // pred_check_branch
      %157 = sbr.rel (0) target = $region29
    $region28: #{tpu_custom_call.1} parent=1 // pred_region
      %158 = dma.done [#allocation4], 256
    $region29: #{tpu_custom_call.1} parent=1 // pred_fallthru
      _
    %159 = vsyncpa [#allocation3], 1
    %160 = vsyncpa [#allocation6], 1
    %161 = vsyncpa [#allocation4], 1

// kernel: tpu_custom_call.1
$region0: #{tpu_custom_call.1}
  #allocation0 [shape = 'u32[]', space=smem, size = 0x4, offset = 0x4, fixed_abs, tag = 'smem constant byte address 0x4 - core index']
  #allocation1 [shape = 'u32[144,128]{1,0:T(1,128)}', space=vmem, size = 0x12000, scoped, tag = 'internal scratch']
  %s0 = inlined_call_operand.hbm [shape: f32[8,32], index: 0, kind: input, shape index: {}]
  %s1 = inlined_call_operand.hbm [shape: f32[32,256], index: 1, kind: input, shape index: {}]
  %s2 = inlined_call_operand.vmem [shape: f32[1,256], index: 2, kind: input, shape index: {}]
  %s3 = inlined_call_operand.hbm [shape: f32[8,256], index: 3, kind: output, shape index: {}]
  %s4 = sld [smem:[#allocation0]]
  $region30: #{tpu_custom_call.1} parent=0
    _
  %s6 = ssub.s32 1, %s4
  %s7 = scalar_select 0, %s6, %s4
  $region1: #{tpu_custom_call.1} parent=0
    #allocation2 [shape = 'u8[4096]{0}', space=vmem, size = 0x1000, scoped, tag = 'input window, operand 0, single buffered']
    #allocation3 [shape = 's32[1]{0}', space=sflag, size = 0x4, scoped, tag = 'scoped memory for tpu_custom_call.1']
    #allocation4 [shape = 's32[1]{0}', space=sflag, size = 0x4, scoped, tag = 'scoped memory for tpu_custom_call.1']
    #allocation5 [shape = 'u8[32768]{0}', space=vmem, size = 0x8000, scoped, tag = 'input window, operand 1, single buffered']
    #allocation6 [shape = 's32[1]{0}', space=sflag, size = 0x4, scoped, tag = 'scoped memory for tpu_custom_call.1']
    #allocation7 [shape = 'u8[8192]{0}', space=vmem, size = 0x2000, scoped, tag = 'output window, operand 0, single buffered']
    %8 = vsyncpa [#allocation3], 0
    %9 = vsyncpa [#allocation6], 0
    %10 = vsyncpa [#allocation4], 0
    // Predicated region
    $region2: #{tpu_custom_call.1} parent=1 // pred_check
      _
    $region3: #{tpu_custom_call.1} parent=1 // pred_check_branch
      %12 = sbr.rel (0) target = $region5
    $region4: #{tpu_custom_call.1} parent=1 // pred_region
      %s14 = ssub.s32 128, 128
      %15 = vsyncadd [#allocation3], %s14
      %s17 = sshll.u32 [#allocation2], 4
      %s18 = int_to_ptr.vmem [resolvable:$true] %s17
      %20 = dma.hbm_to_vmem [thread:$0]  %s0, 128, %s18, [#allocation3]
    $region5: #{tpu_custom_call.1} parent=1 // pred_fallthru
      _
    // Predicated region
    $region6: #{tpu_custom_call.1} parent=1 // pred_check
      _
    $region7: #{tpu_custom_call.1} parent=1 // pred_check_branch
      %22 = sbr.rel (0) target = $region9
    $region8: #{tpu_custom_call.1} parent=1 // pred_region
      %s24 = ssub.s32 1024, 1024
      %25 = vsyncadd [#allocation6], %s24
      %s26 = sshll.u32 [#allocation5], 4
      %s27 = int_to_ptr.vmem [resolvable:$true] %s26
      %32 = dma.hbm_to_vmem [thread:$0]  %s1, 1024, %s27, [#allocation6], 256, 256, 16
    $region9: #{tpu_custom_call.1} parent=1 // pred_fallthru
      _
    // Predicated region
    $region10: #{tpu_custom_call.1} parent=1 // pred_check
      _
    $region11: #{tpu_custom_call.1} parent=1 // pred_check_branch
      %34 = sbr.rel (0) target = $region13
    $region12: #{tpu_custom_call.1} parent=1 // pred_region
      _
    $region13: #{tpu_custom_call.1} parent=1 // pred_fallthru
      _
    // Predicated region
    $region14: #{tpu_custom_call.1} parent=1 // pred_check
      _
    $region15: #{tpu_custom_call.1} parent=1 // pred_check_branch
      %36 = sbr.rel (0) target = $region17
    $region16: #{tpu_custom_call.1} parent=1 // pred_region
      %37 = dma.done [#allocation3], 128
    $region17: #{tpu_custom_call.1} parent=1 // pred_fallthru
      _
    // Predicated region
    $region18: #{tpu_custom_call.1} parent=1 // pred_check
      _
    $region19: #{tpu_custom_call.1} parent=1 // pred_check_branch
      %39 = sbr.rel (0) target = $region21
    $region20: #{tpu_custom_call.1} parent=1 // pred_region
      %40 = dma.done [#allocation6], 1024
    $region21: #{tpu_custom_call.1} parent=1 // pred_fallthru
      _
    %v41 = vld [vmem:[#allocation2] sm:$0xff]
    %v42 = vld [vmem:[#allocation5] sm:$0xff]
    %v43 = vld [vmem:[#allocation5 + $0x8] sm:$0xff]
    %v44 = vld [vmem:[#allocation5 + $0x10] sm:$0xff]
    %v45 = vld [vmem:[#allocation5 + $0x18] sm:$0xff]
    %v46 = vld [vmem:[#allocation5 + $0x20] sm:$0xff]
    %v47 = vld [vmem:[#allocation5 + $0x28] sm:$0xff]
    %v48 = vld [vmem:[#allocation5 + $0x30] sm:$0xff]
    %v49 = vld [vmem:[#allocation5 + $0x38] sm:$0xff]
    %v50 = vld [vmem:[%s2] sm:$0x3]
    %v52 = vlaneseq
    %v53 = vshrl.u32 %v52, 7
    %v54 = vsub.s32 0, %v53
    %v55 = vrot.slane %v50, %v54
    %v56 = vlaneseq
    %v57 = vshrl.u32 %v56, 7
    %v58 = vsub.s32 1, %v57
    %v59 = vrot.slane %v50, %v58
    %vm62 = vcmask 261120
    %v64 = vsel %vm62, %v41, 0
    %66 = vmatprep.subr.mxu0 %v43
    %67 = vmatpush1.msra.mxu0 %v42
    %68 = vmatprep.subr.mxu0 %v45
    %69 = vmatpush1.msra.mxu0 %v44
    %70 = vmatprep.subr.mxu0 %v47
    %71 = vmatpush1.msra.mxu0 %v46
    %72 = vmatprep.subr.mxu0 %v49
    %73 = vmatpush1.msra.mxu0 %v48
    %74 = vmatprep.subr.mxu0 0.0
    %75 = vmatpush1.msra.mxu0 0.0
    %76 = vmatprep.subr.mxu0 0.0
    %77 = vmatpush1.msra.mxu0 0.0
    %78 = vmatprep.subr.mxu0 0.0
    %79 = vmatpush1.msra.mxu0 0.0
    %80 = vmatprep.subr.mxu0 0.0
    %81 = vmatpush1.msra.mxu0 0.0
    %82 = vmatprep.subr.mxu0 0.0
    %83 = vmatpush1.msra.mxu0 0.0
    %84 = vmatprep.subr.mxu0 0.0
    %85 = vmatpush1.msra.mxu0 0.0
    %86 = vmatprep.subr.mxu0 0.0
    %87 = vmatpush1.msra.mxu0 0.0
    %88 = vmatprep.subr.mxu0 0.0
    %89 = vmatpush1.msra.mxu0 0.0
    %90 = vmatprep.subr.mxu0 0.0
    %91 = vmatpush1.msra.mxu0 0.0
    %92 = vmatprep.subr.mxu0 0.0
    %93 = vmatpush1.msra.mxu0 0.0
    %94 = vmatprep.subr.mxu0 0.0
    %95 = vmatpush1.msra.mxu0 0.0
    %96 = vmatprep.subr.mxu0 0.0
    %97 = vmatpush1.msra.mxu0 0.0
    %98 = vmatprep.subr.mxu0 0.0
    %99 = vmatpush1.msra.mxu0 0.0
    %100 = vmatprep.subr.mxu0 0.0
    %101 = vmatpush1.msra.mxu0 0.0
    %102 = vmatprep.subr.mxu0 0.0
    %103 = vmatpush1.msra.mxu0 0.0
    %104 = vmatprep.subr.mxu0 0.0
    %105 = vmatpush1.msra.mxu0 0.0
    %106 = vmatprep.subr.mxu0 0.0
    %107 = vmatpush1.msra.mxu0 0.0
    %108 = vmatprep.subr.mxu0 0.0
    %109 = vmatpush1.msra.mxu0 0.0
    %110 = vmatprep.subr.mxu0 0.0
    %111 = vmatpush1.msra.mxu0 0.0
    %112 = vmatprep.subr.mxu0 0.0
    %113 = vmatpush1.msra.mxu0 0.0
    %114 = vmatprep.subr.mxu0 0.0
    %115 = vmatpush1.msra.mxu0 0.0
    %116 = vmatprep.subr.mxu0 0.0
    %117 = vmatpush1.msra.mxu0 0.0
    %118 = vmatprep.subr.mxu0 0.0
    %119 = vmatpush1.msra.mxu0 0.0
    %120 = vmatprep.subr.mxu0 0.0
    %121 = vmatpush1.msra.mxu0 0.0
    %122 = vmatprep.subr.mxu0 0.0
    %123 = vmatpush1.msra.mxu0 0.0
    %124 = vmatprep.subr.mxu0 0.0
    %125 = vmatpush1.msra.mxu0 0.0
    %126 = vmatprep.subr.mxu0 0.0
    %127 = vmatpush1.msra.mxu0 0.0
    %128 = vmatprep.subr.mxu0 0.0
    %129 = vmatpush1.msra.mxu0 0.0
    %130 = vmatprep.mubr.f32.mxu0 0.0
    %131 = vmatmul.mubr.f32.gmra.mrb[0].mxu0 %v64
    %v132 = vpop.f32.mrb[0].mxu0
    %v133 = vadd.f32 %v55, %v132
    %v134 = vpop.f32.mrb[0].mxu0
    %v135 = vadd.f32 %v59, %v134
    %136 = vdwg.mxu0
    %v137 = vmul.f32 %v133, %v133
    %v138 = vmul.f32 %v135, %v135
    %v139 = vadd.f32 %v137, %v138
    %v140 = vmax.f32 %v139, 1e-24
    %v141 = vrsqrt.pop %v140
    %v142 = vmul.f32 %v133, %v141
    %143 = vst [vmem:[#allocation7] sm:$0xff] %v142
    %v144 = vmul.f32 %v135, %v141
    %145 = vst [vmem:[#allocation7 + $0x8] sm:$0xff] %v144
    // Predicated region
    $region22: #{tpu_custom_call.1} parent=1 // pred_check
      _
    $region23: #{tpu_custom_call.1} parent=1 // pred_check_branch
      %147 = sbr.rel (0) target = $region25
    $region24: #{tpu_custom_call.1} parent=1 // pred_region
      %s149 = ssub.s32 256, 256
      %150 = vsyncadd [#allocation4], %s149
      %s152 = sshll.u32 [#allocation7], 4
      %s153 = int_to_ptr.vmem [resolvable:$true] %s152
      %155 = dma.vmem_to_hbm [thread:$0]  %s153, 256, %s3, [#allocation4]
    $region25: #{tpu_custom_call.1} parent=1 // pred_fallthru
      _
    // Predicated region
    $region26: #{tpu_custom_call.1} parent=1 // pred_check
      _
    $region27: #{tpu_custom_call.1} parent=1 // pred_check_branch
      %157 = sbr.rel (0) target = $region29
    $region28: #{tpu_custom_call.1} parent=1 // pred_region
      %158 = dma.done [#allocation4], 256
    $region29: #{tpu_custom_call.1} parent=1 // pred_fallthru
      _
    %159 = vsyncpa [#allocation3], 1
    %160 = vsyncpa [#allocation6], 1
    %161 = vsyncpa [#allocation4], 1

</llo_original>
